<compile_context>
chip_gen: v5e
topology: v5e:2x2
jax: 0.10.0
libtpu: 0.0.40
codegen_flags: <defaults>
</compile_context>

<pallas_src>
import functools
import math

import jax
import jax.numpy as jnp
from jax import lax
from jax.experimental import pallas as pl
from jax.experimental.pallas import tpu as pltpu


_LOG2_E = 1.4426950408889634      # log2(e): softmax runs in base 2 (exp2 on EUP)
_M_INIT = -1e30                   # finite "minus infinity" init for running max
_VMEM_LIMIT = 64 * 1024 * 1024    # explicit scoped-VMEM limit (safe on v5e/v6e/v7x)


def _pick_tile(dim, target):
    """Largest tile <= target that evenly divides `dim`, preferring multiples of
    128 (lane-dense blocks), then multiples of 8 (f32 sublane tile).  Falls back
    to the full dimension if no divisor exists."""
    if dim <= target:
        return dim
    for step in (128, 8):
        cand = target - (target % step)
        while cand >= step:
            if dim % cand == 0:
                return cand
            cand -= step
    # TODO(synk): support ragged trailing blocks instead of one full-length
    # block (awkward sequence lengths can otherwise bust VMEM on v7x).
    return dim


# ----------------------- fused QKV projection kernel -----------------------


def qkv_proj_kernel(x_ref, wq_ref, bq_ref, wk_ref, bk_ref, wv_ref, bv_ref,
                    q_ref, k_ref, v_ref, *, q_scale):
    # x_ref: (tm, Din); w*: (Din, D); b*: (1, D); outputs: (tm, D).
    # x is loaded into VMEM once per block and feeds three MXU matmuls in the
    # input dtype (f32 accumulation only).  The softmax scale (incl. log2(e)
    # for the exp2 softmax) is folded into q here, once.
    x = x_ref[...]
    q = jnp.dot(x, wq_ref[...], preferred_element_type=jnp.float32) + bq_ref[...]
    q_ref[...] = (q * q_scale).astype(q_ref.dtype)
    k = jnp.dot(x, wk_ref[...], preferred_element_type=jnp.float32) + bk_ref[...]
    k_ref[...] = k.astype(k_ref.dtype)
    v = jnp.dot(x, wv_ref[...], preferred_element_type=jnp.float32) + bv_ref[...]
    v_ref[...] = v.astype(v_ref.dtype)


def qkv_projection(x2d, params, q_scale, *, tm_target=256):
    M, Din = x2d.shape
    D = params["w_q"][0].shape[1]
    tm = _pick_tile(M, tm_target)

    x_spec = pl.BlockSpec((tm, Din), lambda i: (i, 0))
    # Constant-index weights/biases stay VMEM-resident across the M grid (DMA is
    # elided after the first step).
    # TODO(synk): single-buffer these (pipeline_mode=pl.Buffered(1)) and add N/K
    # tiling with an f32 accumulator so large-D weights fit v7x's 64 MiB VMEM.
    w_spec = pl.BlockSpec((Din, D), lambda i: (0, 0))
    b_spec = pl.BlockSpec((1, D), lambda i: (0, 0))
    o_spec = pl.BlockSpec((tm, D), lambda i: (i, 0))

    out_shape = tuple(jax.ShapeDtypeStruct((M, D), x2d.dtype) for _ in range(3))
    kernel = functools.partial(qkv_proj_kernel, q_scale=q_scale)
    return pl.pallas_call(
        kernel,
        out_shape=out_shape,
        grid_spec=pltpu.PrefetchScalarGridSpec(
            num_scalar_prefetch=0,
            grid=(M // tm,),
            in_specs=[x_spec, w_spec, b_spec, w_spec, b_spec, w_spec, b_spec],
            out_specs=(o_spec, o_spec, o_spec),
        ),
        compiler_params=pltpu.CompilerParams(
            dimension_semantics=("parallel",),
            vmem_limit_bytes=_VMEM_LIMIT),
    )(x2d,
      params["w_q"][0], params["w_q"][1].reshape(1, D),
      params["w_k"][0], params["w_k"][1].reshape(1, D),
      params["w_v"][0], params["w_v"][1].reshape(1, D))


# ----------------------------- tiled linear --------------------------------


def linear_kernel(x_ref, w_ref, b_ref, o_ref):
    acc = jnp.dot(x_ref[...], w_ref[...], preferred_element_type=jnp.float32)
    o_ref[...] = (acc + b_ref[...]).astype(o_ref.dtype)


def linear(x2d, w, b, *, tm_target=256):
    M, Din = x2d.shape
    Dout = w.shape[1]
    tm = _pick_tile(M, tm_target)
    # TODO(synk): N/K-tile the weight (f32 accumulator) and single-buffer it for
    # large Din/Dout; optionally fuse this projection into the attention
    # finalize on v5e/v6e to save an HBM round-trip of the attention output.
    return pl.pallas_call(
        linear_kernel,
        out_shape=jax.ShapeDtypeStruct((M, Dout), x2d.dtype),
        grid_spec=pltpu.PrefetchScalarGridSpec(
            num_scalar_prefetch=0,
            grid=(M // tm,),
            in_specs=[
                pl.BlockSpec((tm, Din), lambda i: (i, 0)),
                pl.BlockSpec((Din, Dout), lambda i: (0, 0)),
                pl.BlockSpec((1, Dout), lambda i: (0, 0)),
            ],
            out_specs=pl.BlockSpec((tm, Dout), lambda i: (i, 0)),
        ),
        compiler_params=pltpu.CompilerParams(
            dimension_semantics=("parallel",),
            vmem_limit_bytes=_VMEM_LIMIT),
    )(x2d, w, b.reshape(1, Dout))


# -------------------- flash-style multi-head attention ---------------------


def attn_kernel(q_ref, k_ref, v_ref, o_ref, m_ref, l_ref, acc_ref, *,
                causal, num_heads, tq, tkv):
    # q_ref: (tq, D); k_ref/v_ref: (tkv, D); o_ref: (tq, D)   (D = H * dh)
    # Scratch: m_ref/l_ref: (tq, H) f32 (heads packed along lanes),
    #          acc_ref: (tq, D) f32.
    # The softmax scale * log2(e) is already folded into q, so the online
    # softmax runs in base 2 (exp2) — mathematically identical to base e.
    qi = pl.program_id(1)
    kv = pl.program_id(2)
    D = q_ref.shape[-1]
    dh = D // num_heads

    @pl.when(kv == 0)
    def _():
        m_ref[...] = jnp.full_like(m_ref, _M_INIT)
        l_ref[...] = jnp.zeros_like(l_ref)
        acc_ref[...] = jnp.zeros_like(acc_ref)

    def compute(apply_mask):
        # Keep q/k/v in their native dtype (bf16 stays bf16 on the MXU); only
        # the accumulations are f32.
        q = q_ref[...]
        k = k_ref[...]
        v = v_ref[...]

        if apply_mask:
            row = qi * tq + lax.broadcasted_iota(jnp.int32, (tq, tkv), 0)
            col = kv * tkv + lax.broadcasted_iota(jnp.int32, (tq, tkv), 1)
            mask = col <= row

        m_prev = m_ref[...]          # (tq, H)
        l_prev = l_ref[...]          # (tq, H)
        acc_prev = acc_ref[...]      # (tq, D)

        m_cols, l_cols, alpha_parts, pv_parts = [], [], [], []
        # TODO(synk): when dh is a multiple of 128, batch this head loop into a
        # single dot_general with a head batch dim for full MXU utilization.
        for h in range(num_heads):
            sl = slice(h * dh, (h + 1) * dh)
            # Contract last dims directly — no materialized k transpose.
            s = lax.dot_general(
                q[:, sl], k[:, sl],
                dimension_numbers=(((1,), (1,)), ((), ())),
                preferred_element_type=jnp.float32)           # (tq, tkv), log2 units
            if apply_mask:
                # -inf + finite m init: masked columns always give exp2(-inf)=0,
                # even if a row is fully masked inside this block.
                s = jnp.where(mask, s, -jnp.inf)

            m_h = m_prev[:, h:h + 1]
            m_new = jnp.maximum(m_h, jnp.max(s, axis=-1, keepdims=True))
            alpha = jnp.exp2(m_h - m_new)                     # (tq, 1)
            p = jnp.exp2(s - m_new)                           # (tq, tkv) f32
            l_cols.append(alpha * l_prev[:, h:h + 1]
                          + jnp.sum(p, axis=-1, keepdims=True))
            m_cols.append(m_new)
            alpha_parts.append(jnp.broadcast_to(alpha, (tq, dh)))
            pv_parts.append(jnp.dot(p.astype(v.dtype), v[:, sl],
                                    preferred_element_type=jnp.float32))

        # Single lane-dense stores — no per-head masked vst.msk partial stores.
        m_ref[...] = jnp.concatenate(m_cols, axis=-1)
        l_ref[...] = jnp.concatenate(l_cols, axis=-1)
        acc_ref[...] = (jnp.concatenate(alpha_parts, axis=-1) * acc_prev
                        + jnp.concatenate(pv_parts, axis=-1))

    if causal:
        first_row = qi * tq
        last_row = first_row + (tq - 1)
        first_col = kv * tkv
        last_col = first_col + (tkv - 1)
        fully_visible = last_col <= first_row        # below the diagonal: no mask
        on_diagonal = jnp.logical_and(first_col <= last_row,
                                      jnp.logical_not(fully_visible))
        # Entirely-future blocks run neither branch (compute skipped); their
        # K/V DMA is also elided by the clamped kv index_map in attention().
        pl.when(fully_visible)(lambda: compute(False))
        pl.when(on_diagonal)(lambda: compute(True))
    else:
        compute(False)

    @pl.when(kv == pl.num_programs(2) - 1)
    def _():
        # approx=True (EUP vrcp) is faster; keep the exact path conservative.
        inv = pl.reciprocal(l_ref[...], approx=False)         # (tq, H)
        inv_full = jnp.concatenate(
            [jnp.broadcast_to(inv[:, h:h + 1], (tq, dh)) for h in range(num_heads)],
            axis=-1)                                          # (tq, D), lane-dense
        o_ref[...] = (acc_ref[...] * inv_full).astype(o_ref.dtype)


def attention(q, k, v, *, num_heads, causal, tq_target=256, tkv_target=512):
    # q/k/v: [B, T, D]; heads are sliced out of the last dim inside the kernel,
    # so no [B,H,T,dh] transposes are needed and the stored output block is the
    # lane-dense [tq, D] slab that lands directly in [B, T, D].
    # Per-generation knobs: v6e -> tq_target=512 (128 MiB VMEM); v7x ->
    # tkv_target=256 (64 MiB VMEM); defaults are a safe middle ground.
    B, T, D = q.shape
    assert D % num_heads == 0, "dim_d must be divisible by num_heads"
    tq = _pick_tile(T, tq_target)
    tkv = _pick_tile(T, tkv_target)

    q_spec = pl.BlockSpec((None, tq, D), lambda b, qi, ki: (b, qi, 0))
    o_spec = pl.BlockSpec((None, tq, D), lambda b, qi, ki: (b, qi, 0))

    if causal:
        # Clamp fully-masked (future) kv blocks onto the last visible block so
        # their HBM->VMEM DMA is elided (same block index as the previous step);
        # the kernel skips compute for those blocks.
        def kv_index(b, qi, ki):
            last_visible = (qi * tq + (tq - 1)) // tkv
            return (b, jnp.minimum(ki, last_visible), 0)
    else:
        def kv_index(b, qi, ki):
            return (b, ki, 0)
    kv_spec = pl.BlockSpec((None, tkv, D), kv_index)

    kernel = functools.partial(attn_kernel, causal=causal,
                               num_heads=num_heads, tq=tq, tkv=tkv)
    return pl.pallas_call(
        kernel,
        out_shape=jax.ShapeDtypeStruct((B, T, D), q.dtype),
        grid_spec=pltpu.PrefetchScalarGridSpec(
            num_scalar_prefetch=0,
            grid=(B, T // tq, T // tkv),
            in_specs=[q_spec, kv_spec, kv_spec],
            out_specs=o_spec,
            scratch_shapes=[
                pltpu.VMEM((tq, num_heads), jnp.float32),  # running max (log2)
                pltpu.VMEM((tq, num_heads), jnp.float32),  # running denominator
                pltpu.VMEM((tq, D), jnp.float32),          # output accumulator
            ],
        ),
        compiler_params=pltpu.CompilerParams(
            dimension_semantics=("parallel", "parallel", "arbitrary"),
            vmem_limit_bytes=_VMEM_LIMIT),
    )(q, k, v)


# ----------------------------- module wrapper -------------------------------


def init_params(key, dim_d):
    # Deterministic init mimicking nn.Linear's uniform(-1/sqrt(in), 1/sqrt(in)).
    bound = 1.0 / math.sqrt(dim_d)
    keys = jax.random.split(key, 8)
    params = {}
    for i, name in enumerate(["w_q", "w_k", "w_v", "w_out"]):
        w = jax.random.uniform(
            keys[2 * i], (dim_d, dim_d), jnp.float32, -bound, bound)
        b = jax.random.uniform(
            keys[2 * i + 1], (dim_d,), jnp.float32, -bound, bound)
        params[name] = (w, b)  # stored pre-transposed as [D_in, D_out]
    return params


def multi_head_attention(params, x, *, num_heads, temperature=1.0,
                         causal_mask=False):
    # x: [B, T, D]
    B, T, D = x.shape
    dim_head = D // num_heads
    x2d = x.reshape(B * T, D)

    # Softmax scale (temperature / sqrt(dh)) * log2(e) folded into q ONCE here
    # (exp2-based online softmax in the attention kernel).
    q_scale = temperature / math.sqrt(dim_head) * _LOG2_E
    q2d, k2d, v2d = qkv_projection(x2d, params, q_scale)

    out = attention(q2d.reshape(B, T, D), k2d.reshape(B, T, D),
                    v2d.reshape(B, T, D),
                    num_heads=num_heads, causal=causal_mask)   # [B, T, D]

    out2d = linear(out.reshape(B * T, D), *params["w_out"])
    return out2d.reshape(B, T, D)


# ----------------------------- reference (plain JAX) ------------------------


def reference(params, x, *, num_heads, temperature=1.0, causal_mask=False):
    B, T, D = x.shape
    dh = D // num_heads

    def lin(t, w, b):
        return t @ w + b

    q = lin(x, *params["w_q"]).reshape(B, T, num_heads, dh).transpose(0, 2, 1, 3)
    k = lin(x, *params["w_k"]).reshape(B, T, num_heads, dh).transpose(0, 2, 1, 3)
    v = lin(x, *params["w_v"]).reshape(B, T, num_heads, dh).transpose(0, 2, 1, 3)
    s = jnp.einsum("bhqd,bhtd->bhqt", q, k)
    if causal_mask:
        mask = jnp.tril(jnp.ones((T, T)))
        s = jnp.where(mask == 0, -jnp.inf, s)
    a = jax.nn.softmax(s * temperature / math.sqrt(dh), axis=-1)
    o = jnp.einsum("bhqt,bhtd->bhqd", a, v)
    o = o.transpose(0, 2, 1, 3).reshape(B, T, D)
    return lin(o, *params["w_out"])


# ----------------------------- main ----------------------------------------

if __name__ == "__main__":
    B, T, D, H = 2, 8, 32, 4  # small shapes; dim_head = 8
    key = jax.random.PRNGKey(0)
    kx, kp = jax.random.split(key)
    x = jax.random.normal(kx, (B, T, D), jnp.float32)
    params = init_params(kp, D)

    for causal in (False, True):
        out = multi_head_attention(params, x, num_heads=H, temperature=1.0,
                                   causal_mask=causal)
        out = jax.block_until_ready(out)
        ref = reference(params, x, num_heads=H, temperature=1.0,
                        causal_mask=causal)
        assert out.shape == (B, T, D)
        # Tolerance covers bf16 MXU passes that XLA/Mosaic may use for f32
        # matmuls at default precision (kernel vs. reference use different
        # pass decompositions / accumulation orders).
        err = jnp.max(jnp.abs(out - ref))
        assert jnp.allclose(out, ref, atol=2e-2, rtol=2e-2), (
            f"mismatch vs reference (causal={causal}): max abs err {err}")

    print("KERNEL_OK")
</pallas_src>

<mosaic_0001>
module attributes {stable_mosaic.version = 11 : i64} {
  func.func @qkv_proj_kernel(%arg0: i32, %arg1: memref<16x32xf32, #tpu.memory_space<vmem>>, %arg2: memref<32x32xf32, #tpu.memory_space<vmem>>, %arg3: memref<1x32xf32, #tpu.memory_space<vmem>>, %arg4: memref<32x32xf32, #tpu.memory_space<vmem>>, %arg5: memref<1x32xf32, #tpu.memory_space<vmem>>, %arg6: memref<32x32xf32, #tpu.memory_space<vmem>>, %arg7: memref<1x32xf32, #tpu.memory_space<vmem>>, %arg8: memref<16x32xf32, #tpu.memory_space<vmem>>, %arg9: memref<16x32xf32, #tpu.memory_space<vmem>>, %arg10: memref<16x32xf32, #tpu.memory_space<vmem>>) attributes {dimension_semantics = [#tpu.dimension_semantics<parallel>], iteration_bounds = array<i64: 1>, scalar_prefetch = 0 : i64, scratch_operands = 0 : i64, tpu.core_type = #tpu.core_type<tc>, window_params = [{transform_indices = @transform_0, window_bounds = array<i64: 16, 32>}, {pipeline_mode = #tpu.pipeline_mode<synchronous>, transform_indices = @transform_1, window_bounds = array<i64: 32, 32>}, {pipeline_mode = #tpu.pipeline_mode<synchronous>, transform_indices = @transform_2, window_bounds = array<i64: 1, 32>}, {pipeline_mode = #tpu.pipeline_mode<synchronous>, transform_indices = @transform_3, window_bounds = array<i64: 32, 32>}, {pipeline_mode = #tpu.pipeline_mode<synchronous>, transform_indices = @transform_4, window_bounds = array<i64: 1, 32>}, {pipeline_mode = #tpu.pipeline_mode<synchronous>, transform_indices = @transform_5, window_bounds = array<i64: 32, 32>}, {pipeline_mode = #tpu.pipeline_mode<synchronous>, transform_indices = @transform_6, window_bounds = array<i64: 1, 32>}, {transform_indices = @transform_7, window_bounds = array<i64: 16, 32>}, {transform_indices = @transform_8, window_bounds = array<i64: 16, 32>}, {transform_indices = @transform_9, window_bounds = array<i64: 16, 32>}]} {
    %c0 = arith.constant 0 : index
    %c0_0 = arith.constant 0 : index
    %0 = vector.load %arg1[%c0, %c0_0] : memref<16x32xf32, #tpu.memory_space<vmem>>, vector<16x32xf32>
    %c0_1 = arith.constant 0 : index
    %c0_2 = arith.constant 0 : index
    %1 = vector.load %arg2[%c0_1, %c0_2] : memref<32x32xf32, #tpu.memory_space<vmem>>, vector<32x32xf32>
    %cst = arith.constant dense<0.000000e+00> : vector<16x32xf32>
    %2 = tpu.matmul %0, %1, %cst {dimension_numbers = #tpu.dot_dimension_numbers<[1], [0], [0], [1], [0, 0, 1, 1], [], []>} : vector<16x32xf32>, vector<32x32xf32>, vector<16x32xf32> -> vector<16x32xf32>
    %c0_3 = arith.constant 0 : index
    %c0_4 = arith.constant 0 : index
    %3 = vector.load %arg3[%c0_3, %c0_4] : memref<1x32xf32, #tpu.memory_space<vmem>>, vector<1x32xf32>
    %4 = vector.broadcast %3 : vector<1x32xf32> to vector<16x32xf32>
    %5 = arith.addf %2, %4 : vector<16x32xf32>
    %cst_5 = arith.constant 0.510069728 : f32
    %6 = vector.broadcast %cst_5 : f32 to vector<16x32xf32>
    %7 = arith.mulf %5, %6 : vector<16x32xf32>
    %c0_6 = arith.constant 0 : index
    %c0_7 = arith.constant 0 : index
    %8 = vector.load %arg8[%c0_6, %c0_7] : memref<16x32xf32, #tpu.memory_space<vmem>>, vector<16x32xf32>
    tpu.vector_store %arg8[%c0_6, %c0_7], %7 {strides = array<i32>} : memref<16x32xf32, #tpu.memory_space<vmem>>, vector<16x32xf32>,
    %c0_8 = arith.constant 0 : index
    %c0_9 = arith.constant 0 : index
    %9 = vector.load %arg4[%c0_8, %c0_9] : memref<32x32xf32, #tpu.memory_space<vmem>>, vector<32x32xf32>
    %cst_10 = arith.constant dense<0.000000e+00> : vector<16x32xf32>
    %10 = tpu.matmul %0, %9, %cst_10 {dimension_numbers = #tpu.dot_dimension_numbers<[1], [0], [0], [1], [0, 0, 1, 1], [], []>} : vector<16x32xf32>, vector<32x32xf32>, vector<16x32xf32> -> vector<16x32xf32>
    %c0_11 = arith.constant 0 : index
    %c0_12 = arith.constant 0 : index
    %11 = vector.load %arg5[%c0_11, %c0_12] : memref<1x32xf32, #tpu.memory_space<vmem>>, vector<1x32xf32>
    %12 = vector.broadcast %11 : vector<1x32xf32> to vector<16x32xf32>
    %13 = arith.addf %10, %12 : vector<16x32xf32>
    %c0_13 = arith.constant 0 : index
    %c0_14 = arith.constant 0 : index
    %14 = vector.load %arg9[%c0_13, %c0_14] : memref<16x32xf32, #tpu.memory_space<vmem>>, vector<16x32xf32>
    tpu.vector_store %arg9[%c0_13, %c0_14], %13 {strides = array<i32>} : memref<16x32xf32, #tpu.memory_space<vmem>>, vector<16x32xf32>,
    %c0_15 = arith.constant 0 : index
    %c0_16 = arith.constant 0 : index
    %15 = vector.load %arg6[%c0_15, %c0_16] : memref<32x32xf32, #tpu.memory_space<vmem>>, vector<32x32xf32>
    %cst_17 = arith.constant dense<0.000000e+00> : vector<16x32xf32>
    %16 = tpu.matmul %0, %15, %cst_17 {dimension_numbers = #tpu.dot_dimension_numbers<[1], [0], [0], [1], [0, 0, 1, 1], [], []>} : vector<16x32xf32>, vector<32x32xf32>, vector<16x32xf32> -> vector<16x32xf32>
    %c0_18 = arith.constant 0 : index
    %c0_19 = arith.constant 0 : index
    %17 = vector.load %arg7[%c0_18, %c0_19] : memref<1x32xf32, #tpu.memory_space<vmem>>, vector<1x32xf32>
    %18 = vector.broadcast %17 : vector<1x32xf32> to vector<16x32xf32>
    %19 = arith.addf %16, %18 : vector<16x32xf32>
    %c0_20 = arith.constant 0 : index
    %c0_21 = arith.constant 0 : index
    %20 = vector.load %arg10[%c0_20, %c0_21] : memref<16x32xf32, #tpu.memory_space<vmem>>, vector<16x32xf32>
    tpu.vector_store %arg10[%c0_20, %c0_21], %19 {strides = array<i32>} : memref<16x32xf32, #tpu.memory_space<vmem>>, vector<16x32xf32>,
    return
  }
  func.func @transform_0(%arg0: i32) -> (i32, i32) {
    %c0_i32 = arith.constant 0 : i32
    %c0_i32_0 = arith.constant 0 : i32
    return %arg0, %c0_i32 : i32, i32
  }
  func.func @transform_1(%arg0: i32) -> (i32, i32) {
    %c0_i32 = arith.constant 0 : i32
    %c0_i32_0 = arith.constant 0 : i32
    %c0_i32_1 = arith.constant 0 : i32
    return %c0_i32, %c0_i32_0 : i32, i32
  }
  func.func @transform_2(%arg0: i32) -> (i32, i32) {
    %c0_i32 = arith.constant 0 : i32
    %c0_i32_0 = arith.constant 0 : i32
    %c0_i32_1 = arith.constant 0 : i32
    return %c0_i32, %c0_i32_0 : i32, i32
  }
  func.func @transform_3(%arg0: i32) -> (i32, i32) {
    %c0_i32 = arith.constant 0 : i32
    %c0_i32_0 = arith.constant 0 : i32
    %c0_i32_1 = arith.constant 0 : i32
    return %c0_i32, %c0_i32_0 : i32, i32
  }
  func.func @transform_4(%arg0: i32) -> (i32, i32) {
    %c0_i32 = arith.constant 0 : i32
    %c0_i32_0 = arith.constant 0 : i32
    %c0_i32_1 = arith.constant 0 : i32
    return %c0_i32, %c0_i32_0 : i32, i32
  }
  func.func @transform_5(%arg0: i32) -> (i32, i32) {
    %c0_i32 = arith.constant 0 : i32
    %c0_i32_0 = arith.constant 0 : i32
    %c0_i32_1 = arith.constant 0 : i32
    return %c0_i32, %c0_i32_0 : i32, i32
  }
  func.func @transform_6(%arg0: i32) -> (i32, i32) {
    %c0_i32 = arith.constant 0 : i32
    %c0_i32_0 = arith.constant 0 : i32
    %c0_i32_1 = arith.constant 0 : i32
    return %c0_i32, %c0_i32_0 : i32, i32
  }
  func.func @transform_7(%arg0: i32) -> (i32, i32) {
    %c0_i32 = arith.constant 0 : i32
    %c0_i32_0 = arith.constant 0 : i32
    return %arg0, %c0_i32 : i32, i32
  }
  func.func @transform_8(%arg0: i32) -> (i32, i32) {
    %c0_i32 = arith.constant 0 : i32
    %c0_i32_0 = arith.constant 0 : i32
    return %arg0, %c0_i32 : i32, i32
  }
  func.func @transform_9(%arg0: i32) -> (i32, i32) {
    %c0_i32 = arith.constant 0 : i32
    %c0_i32_0 = arith.constant 0 : i32
    return %arg0, %c0_i32 : i32, i32
  }
}

</mosaic_0001>

<llo_original>
// kernel: tpu_custom_call.1
$region0: #{tpu_custom_call.1}
  #allocation0 [shape = 'u32[]', space=smem, size = 0x4, offset = 0x4, fixed_abs, tag = 'smem constant byte address 0x4 - core index']
  #allocation1 [shape = 'u32[72,128]{1,0:T(1,128)}', space=vmem, size = 0x9000, scoped, tag = 'internal scratch']
  %s0 = inlined_call_operand.hbm [shape: f32[16,32], index: 0, kind: input, shape index: {}]
  %s1 = inlined_call_operand.hbm [shape: f32[32,32], index: 1, kind: input, shape index: {}]
  %s2 = inlined_call_operand.vmem [shape: f32[1,32], index: 2, kind: input, shape index: {}]
  %s3 = inlined_call_operand.hbm [shape: f32[32,32], index: 3, kind: input, shape index: {}]
  %s4 = inlined_call_operand.vmem [shape: f32[1,32], index: 4, kind: input, shape index: {}]
  %s5 = inlined_call_operand.hbm [shape: f32[32,32], index: 5, kind: input, shape index: {}]
  %s6 = inlined_call_operand.vmem [shape: f32[1,32], index: 6, kind: input, shape index: {}]
  %s7 = inlined_call_operand.hbm [shape: f32[16,32], index: 7, kind: output, shape index: {0}]
  %s8 = inlined_call_operand.hbm [shape: f32[16,32], index: 8, kind: output, shape index: {1}]
  %s9 = inlined_call_operand.hbm [shape: f32[16,32], index: 9, kind: output, shape index: {2}]
  %10 = xla_tuple %s7, %s8, %s9
  %s11 = sld [smem:[#allocation0]]
  $region70: #{tpu_custom_call.1} parent=0
    _
  %s13 = ssub.s32 1, %s11
  %s14 = scalar_select 0, %s13, %s11
  $region1: #{tpu_custom_call.1} parent=0
    #allocation2 [shape = 'u8[8192]{0}', space=vmem, size = 0x2000, scoped, tag = 'input window, operand 0, single buffered']
    #allocation3 [shape = 's32[1]{0}', space=sflag, size = 0x4, scoped, tag = 'scoped memory for tpu_custom_call.1']
    #allocation4 [shape = 's32[1]{0}', space=sflag, size = 0x4, scoped, tag = 'scoped memory for tpu_custom_call.1']
    #allocation5 [shape = 'u8[16384]{0}', space=vmem, size = 0x4000, scoped, tag = 'input window, operand 1, single buffered']
    #allocation6 [shape = 's32[1]{0}', space=sflag, size = 0x4, scoped, tag = 'scoped memory for tpu_custom_call.1']
    #allocation7 [shape = 'u8[16384]{0}', space=vmem, size = 0x4000, scoped, tag = 'input window, operand 3, single buffered']
    #allocation8 [shape = 'u8[16384]{0}', space=vmem, size = 0x4000, scoped, tag = 'input window, operand 5, single buffered']
    #allocation9 [shape = 's32[1]{0}', space=sflag, size = 0x4, scoped, tag = 'scoped memory for tpu_custom_call.1']
    #allocation10 [shape = 'u8[8192]{0}', space=vmem, size = 0x2000, scoped, tag = 'output window, operand 0, single buffered']
    #allocation11 [shape = 'u8[8192]{0}', space=vmem, size = 0x2000, scoped, tag = 'output window, operand 1, single buffered']
    #allocation12 [shape = 's32[1]{0}', space=sflag, size = 0x4, scoped, tag = 'scoped memory for tpu_custom_call.1']
    #allocation13 [shape = 'u8[8192]{0}', space=vmem, size = 0x2000, scoped, tag = 'output window, operand 2, single buffered']
    %15 = vsyncpa [#allocation3], 0
    %16 = vsyncpa [#allocation6], 0
    %17 = vsyncpa [#allocation9], 0
    %18 = vsyncpa [#allocation4], 0
    %19 = vsyncpa [#allocation12], 0
    // Predicated region
    $region2: #{tpu_custom_call.1} parent=1 // pred_check
      _
    $region3: #{tpu_custom_call.1} parent=1 // pred_check_branch
      %21 = sbr.rel (0) target = $region5
    $region4: #{tpu_custom_call.1} parent=1 // pred_region
      %23 = vsyncadd [#allocation3], 0
      %s24 = sshll.u32 %s0, 4
      %s25 = int_to_ptr.hbm [resolvable:$true] %s24
      %s26 = sshll.u32 [#allocation2], 4
      %s27 = int_to_ptr.vmem [resolvable:$true] %s26
      %32 = dma.hbm_to_vmem [thread:$0]  %s25, 256, %s27, [#allocation3], 128, 128, 8
    $region5: #{tpu_custom_call.1} parent=1 // pred_fallthru
      _
    // Predicated region
    $region6: #{tpu_custom_call.1} parent=1 // pred_check
      _
    $region7: #{tpu_custom_call.1} parent=1 // pred_check_branch
      %34 = sbr.rel (0) target = $region9
    $region8: #{tpu_custom_call.1} parent=1 // pred_region
      %36 = vsyncadd [#allocation6], 0
      %s37 = sshll.u32 %s1, 4
      %s38 = int_to_ptr.hbm [resolvable:$true] %s37
      %s39 = sshll.u32 [#allocation5], 4
      %s40 = int_to_ptr.vmem [resolvable:$true] %s39
      %45 = dma.hbm_to_vmem [thread:$0]  %s38, 512, %s40, [#allocation6], 128, 128, 8
    $region9: #{tpu_custom_call.1} parent=1 // pred_fallthru
      _
    // Predicated region
    $region10: #{tpu_custom_call.1} parent=1 // pred_check
      _
    $region11: #{tpu_custom_call.1} parent=1 // pred_check_branch
      %47 = sbr.rel (0) target = $region13
    $region12: #{tpu_custom_call.1} parent=1 // pred_region
      _
    $region13: #{tpu_custom_call.1} parent=1 // pred_fallthru
      _
    // Predicated region
    $region14: #{tpu_custom_call.1} parent=1 // pred_check
      _
    $region15: #{tpu_custom_call.1} parent=1 // pred_check_branch
      %49 = sbr.rel (0) target = $region17
    $region16: #{tpu_custom_call.1} parent=1 // pred_region
      %51 = vsyncadd [#allocation6], 0
      %s52 = sshll.u32 %s3, 4
      %s53 = int_to_ptr.hbm [resolvable:$true] %s52
      %s54 = sshll.u32 [#allocation7], 4
      %s55 = int_to_ptr.vmem [resolvable:$true] %s54
      %60 = dma.hbm_to_vmem [thread:$0]  %s53, 512, %s55, [#allocation6], 128, 128, 8
    $region17: #{tpu_custom_call.1} parent=1 // pred_fallthru
      _
    // Predicated region
    $region18: #{tpu_custom_call.1} parent=1 // pred_check
      _
    $region19: #{tpu_custom_call.1} parent=1 // pred_check_branch
      %62 = sbr.rel (0) target = $region21
    $region20: #{tpu_custom_call.1} parent=1 // pred_region
      _
    $region21: #{tpu_custom_call.1} parent=1 // pred_fallthru
      _
    // Predicated region
    $region22: #{tpu_custom_call.1} parent=1 // pred_check
      _
    $region23: #{tpu_custom_call.1} parent=1 // pred_check_branch
      %64 = sbr.rel (0) target = $region25
    $region24: #{tpu_custom_call.1} parent=1 // pred_region
      %66 = vsyncadd [#allocation9], 0
      %s67 = sshll.u32 %s5, 4
      %s68 = int_to_ptr.hbm [resolvable:$true] %s67
      %s69 = sshll.u32 [#allocation8], 4
      %s70 = int_to_ptr.vmem [resolvable:$true] %s69
      %75 = dma.hbm_to_vmem [thread:$0]  %s68, 512, %s70, [#allocation9], 128, 128, 8
    $region25: #{tpu_custom_call.1} parent=1 // pred_fallthru
      _
    // Predicated region
    $region26: #{tpu_custom_call.1} parent=1 // pred_check
      _
    $region27: #{tpu_custom_call.1} parent=1 // pred_check_branch
      %77 = sbr.rel (0) target = $region29
    $region28: #{tpu_custom_call.1} parent=1 // pred_region
      _
    $region29: #{tpu_custom_call.1} parent=1 // pred_fallthru
      _
    // Predicated region
    $region30: #{tpu_custom_call.1} parent=1 // pred_check
      _
    $region31: #{tpu_custom_call.1} parent=1 // pred_check_branch
      %79 = sbr.rel (0) target = $region33
    $region32: #{tpu_custom_call.1} parent=1 // pred_region
      %81 = dma.done [#allocation3], 256
    $region33: #{tpu_custom_call.1} parent=1 // pred_fallthru
      _
    // Predicated region
    $region34: #{tpu_custom_call.1} parent=1 // pred_check
      _
    $region35: #{tpu_custom_call.1} parent=1 // pred_check_branch
      %83 = sbr.rel (0) target = $region37
    $region36: #{tpu_custom_call.1} parent=1 // pred_region
      %85 = dma.done [#allocation6], 512
    $region37: #{tpu_custom_call.1} parent=1 // pred_fallthru
      _
    // Predicated region
    $region38: #{tpu_custom_call.1} parent=1 // pred_check
      _
    $region39: #{tpu_custom_call.1} parent=1 // pred_check_branch
      %87 = sbr.rel (0) target = $region41
    $region40: #{tpu_custom_call.1} parent=1 // pred_region
      %89 = dma.done [#allocation6], 512
    $region41: #{tpu_custom_call.1} parent=1 // pred_fallthru
      _
    // Predicated region
    $region42: #{tpu_custom_call.1} parent=1 // pred_check
      _
    $region43: #{tpu_custom_call.1} parent=1 // pred_check_branch
      %91 = sbr.rel (0) target = $region45
    $region44: #{tpu_custom_call.1} parent=1 // pred_region
      %93 = dma.done [#allocation9], 512
    $region45: #{tpu_custom_call.1} parent=1 // pred_fallthru
      _
    %v94 = vld [vmem:[#allocation2] sm:$0xff]
    %v95 = vld [vmem:[#allocation2 + $0x8] sm:$0xff]
    %v96 = vld [vmem:[#allocation5] sm:$0xff]
    %v97 = vld [vmem:[#allocation5 + $0x8] sm:$0xff]
    %v98 = vld [vmem:[#allocation5 + $0x10] sm:$0xff]
    %v99 = vld [vmem:[#allocation5 + $0x18] sm:$0xff]
    %v100 = vld [vmem:[%s2] sm:$0x1]
    %v102 = vperm.slane %v100, 0
    %vm104 = vcmask 261120
    %v106 = vsel %vm104, %v94, 0
    %v109 = vsel %vm104, %v95, 0
    %111 = vmatpush.msra.mxu0 0.0
    %112 = vmatpush.msra.mxu0 0.0
    %113 = vmatpush.msra.mxu0 0.0
    %114 = vmatpush.msra.mxu0 0.0
    %115 = vmatpush.msra.mxu0 0.0
    %116 = vmatpush.msra.mxu0 0.0
    %117 = vmatpush.msra.mxu0 0.0
    %118 = vmatpush.msra.mxu0 0.0
    %119 = vmatpush.msra.mxu0 0.0
    %120 = vmatpush.msra.mxu0 0.0
    %121 = vmatpush.msra.mxu0 0.0
    %122 = vmatpush.msra.mxu0 0.0
    %123 = vmatpush.msra.mxu0 %v99
    %124 = vmatpush.msra.mxu0 %v98
    %125 = vmatpush.msra.mxu0 %v97
    %126 = vmatpush.msra.mxu0 %v96
    %127 = vmatmul.f32.gmra.mxu0 %v106
    %v128 = vpop.f32.mrf.mxu0
    %v129 = vadd.f32 %v102, %v128
    %130 = vmatmul.f32.gmra.mxu0 %v109
    %v131 = vpop.f32.mrf.mxu0
    %v132 = vadd.f32 %v102, %v131
    %133 = vdwg.mxu0
    %v134 = vmul.f32 %v129, 0.5100697
    %v135 = vmul.f32 %v132, 0.5100697
    %136 = vst.msk [vmem:[#allocation10] sm:$0xff] %vm104, %v134
    %137 = vst.msk [vmem:[#allocation10 + $0x8] sm:$0xff] %vm104, %v135
    %v138 = vld [vmem:[#allocation7] sm:$0xff]
    %v139 = vld [vmem:[#allocation7 + $0x8] sm:$0xff]
    %v140 = vld [vmem:[#allocation7 + $0x10] sm:$0xff]
    %v141 = vld [vmem:[#allocation7 + $0x18] sm:$0xff]
    %v142 = vld [vmem:[%s4] sm:$0x1]
    %v144 = vperm.slane %v142, 0
    %146 = vmatpush.msra.mxu0 0.0
    %147 = vmatpush.msra.mxu0 0.0
    %148 = vmatpush.msra.mxu0 0.0
    %149 = vmatpush.msra.mxu0 0.0
    %150 = vmatpush.msra.mxu0 0.0
    %151 = vmatpush.msra.mxu0 0.0
    %152 = vmatpush.msra.mxu0 0.0
    %153 = vmatpush.msra.mxu0 0.0
    %154 = vmatpush.msra.mxu0 0.0
    %155 = vmatpush.msra.mxu0 0.0
    %156 = vmatpush.msra.mxu0 0.0
    %157 = vmatpush.msra.mxu0 0.0
    %158 = vmatpush.msra.mxu0 %v141
    %159 = vmatpush.msra.mxu0 %v140
    %160 = vmatpush.msra.mxu0 %v139
    %161 = vmatpush.msra.mxu0 %v138
    %162 = vmatmul.f32.gmra.mxu0 %v106
    %v163 = vpop.f32.mrf.mxu0
    %v164 = vadd.f32 %v144, %v163
    %165 = vmatmul.f32.gmra.mxu0 %v109
    %v166 = vpop.f32.mrf.mxu0
    %v167 = vadd.f32 %v144, %v166
    %168 = vdwg.mxu0
    %169 = vst.msk [vmem:[#allocation11] sm:$0xff] %vm104, %v164
    %170 = vst.msk [vmem:[#allocation11 + $0x8] sm:$0xff] %vm104, %v167
    %v171 = vld [vmem:[#allocation8] sm:$0xff]
    %v172 = vld [vmem:[#allocation8 + $0x8] sm:$0xff]
    %v173 = vld [vmem:[#allocation8 + $0x10] sm:$0xff]
    %v174 = vld [vmem:[#allocation8 + $0x18] sm:$0xff]
    %v175 = vld [vmem:[%s6] sm:$0x1]
    %v177 = vperm.slane %v175, 0
    %179 = vmatpush.msra.mxu0 0.0
    %180 = vmatpush.msra.mxu0 0.0
    %181 = vmatpush.msra.mxu0 0.0
    %182 = vmatpush.msra.mxu0 0.0
    %183 = vmatpush.msra.mxu0 0.0
    %184 = vmatpush.msra.mxu0 0.0
    %185 = vmatpush.msra.mxu0 0.0
    %186 = vmatpush.msra.mxu0 0.0
    %187 = vmatpush.msra.mxu0 0.0
    %188 = vmatpush.msra.mxu0 0.0
    %189 = vmatpush.msra.mxu0 0.0
    %190 = vmatpush.msra.mxu0 0.0
    %191 = vmatpush.msra.mxu0 %v174
    %192 = vmatpush.msra.mxu0 %v173
    %193 = vmatpush.msra.mxu0 %v172
    %194 = vmatpush.msra.mxu0 %v171
    %195 = vmatmul.f32.gmra.mxu0 %v106
    %v196 = vpop.f32.mrf.mxu0
    %v197 = vadd.f32 %v177, %v196
    %198 = vmatmul.f32.gmra.mxu0 %v109
    %v199 = vpop.f32.mrf.mxu0
    %v200 = vadd.f32 %v177, %v199
    %201 = vdwg.mxu0
    %202 = vst.msk [vmem:[#allocation13] sm:$0xff] %vm104, %v197
    %203 = vst.msk [vmem:[#allocation13 + $0x8] sm:$0xff] %vm104, %v200
    // Predicated region
    $region46: #{tpu_custom_call.1} parent=1 // pred_check
      _
    $region47: #{tpu_custom_call.1} parent=1 // pred_check_branch
      %205 = sbr.rel (0) target = $region49
    $region48: #{tpu_custom_call.1} parent=1 // pred_region
      %207 = vsyncadd [#allocation4], 0
      %s208 = sshll.u32 [#allocation10], 4
      %s209 = int_to_ptr.vmem [resolvable:$true] %s208
      %s210 = sshll.u32 %s7, 4
      %s211 = int_to_ptr.hbm [resolvable:$true] %s210
      %216 = dma.vmem_to_hbm [thread:$0]  %s209, 256, %s211, [#allocation4], 128, 128, 8
    $region49: #{tpu_custom_call.1} parent=1 // pred_fallthru
      _
    // Predicated region
    $region50: #{tpu_custom_call.1} parent=1 // pred_check
      _
    $region51: #{tpu_custom_call.1} parent=1 // pred_check_branch
      %218 = sbr.rel (0) target = $region53
    $region52: #{tpu_custom_call.1} parent=1 // pred_region
      %220 = vsyncadd [#allocation12], 0
      %s221 = sshll.u32 [#allocation11], 4
      %s222 = int_to_ptr.vmem [resolvable:$true] %s221
      %s223 = sshll.u32 %s8, 4
      %s224 = int_to_ptr.hbm [resolvable:$true] %s223
      %229 = dma.vmem_to_hbm [thread:$0]  %s222, 256, %s224, [#allocation12], 128, 128, 8
    $region53: #{tpu_custom_call.1} parent=1 // pred_fallthru
      _
    // Predicated region
    $region54: #{tpu_custom_call.1} parent=1 // pred_check
      _
    $region55: #{tpu_custom_call.1} parent=1 // pred_check_branch
      %231 = sbr.rel (0) target = $region57
    $region56: #{tpu_custom_call.1} parent=1 // pred_region
      %233 = vsyncadd [#allocation12], 0
      %s234 = sshll.u32 [#allocation13], 4
      %s235 = int_to_ptr.vmem [resolvable:$true] %s234
      %s236 = sshll.u32 %s9, 4
      %s237 = int_to_ptr.hbm [resolvable:$true] %s236
      %242 = dma.vmem_to_hbm [thread:$0]  %s235, 256, %s237, [#allocation12], 128, 128, 8
    $region57: #{tpu_custom_call.1} parent=1 // pred_fallthru
      _
    // Predicated region
    $region58: #{tpu_custom_call.1} parent=1 // pred_check
      _
    $region59: #{tpu_custom_call.1} parent=1 // pred_check_branch
      %244 = sbr.rel (0) target = $region61
    $region60: #{tpu_custom_call.1} parent=1 // pred_region
      %246 = dma.done [#allocation4], 256
    $region61: #{tpu_custom_call.1} parent=1 // pred_fallthru
      _
    // Predicated region
    $region62: #{tpu_custom_call.1} parent=1 // pred_check
      _
    $region63: #{tpu_custom_call.1} parent=1 // pred_check_branch
      %248 = sbr.rel (0) target = $region65
    $region64: #{tpu_custom_call.1} parent=1 // pred_region
      %250 = dma.done [#allocation12], 256
    $region65: #{tpu_custom_call.1} parent=1 // pred_fallthru
      _
    // Predicated region
    $region66: #{tpu_custom_call.1} parent=1 // pred_check
      _
    $region67: #{tpu_custom_call.1} parent=1 // pred_check_branch
      %252 = sbr.rel (0) target = $region69
    $region68: #{tpu_custom_call.1} parent=1 // pred_region
      %254 = dma.done [#allocation12], 256
    $region69: #{tpu_custom_call.1} parent=1 // pred_fallthru
      _
    %255 = vsyncpa [#allocation3], 1
    %256 = vsyncpa [#allocation6], 1
    %257 = vsyncpa [#allocation9], 1
    %258 = vsyncpa [#allocation4], 1
    %259 = vsyncpa [#allocation12], 1

</llo_original>
